<compile_context>
chip_gen: v7x
topology: tpu7x:2x2x1
jax: 0.10.0
libtpu: 0.0.40
codegen_flags: <defaults>
</compile_context>

<pallas_src>
import jax
import jax.numpy as jnp
from jax import lax
from jax.experimental import pallas as pl
from jax.experimental.pallas import tpu as pltpu

# ----------------------------- configuration -------------------------------
B = 2                       # batch
C_RES = 8                   # residual_channels
C_DIL = 16                  # dilation_channels
C_COND = 8                  # conditioning_channels
T = 128                     # sequence length (lane-aligned)
K = 2                       # kernel_size
DILATION = 2
PAD = (K - 1) * DILATION    # causal left context

N_LANES = B * T             # batch folded into lanes
N_IN = K * C_RES + C_COND   # stacked operand rows (K taps + conditioning)


# ------------------------------- kernel ------------------------------------
def wavenet_layer_kernel(x_ref, h_ref, a_ref, bfg_ref, wo_ref, bo_ref, out_ref):
    """Whole layer in one invocation; batch collapsed into the lane axis.

    x_ref   : (C_RES,  B*T)             residual input, lanes = [b0 t0..T-1, b1 ...]
    h_ref   : (C_COND, B*T)             conditioning signal (same lane layout)
    a_ref   : (2*C_DIL, K*C_RES+C_COND) rows 0..C_DIL-1  = [Wd_0 | Wd_1 | Vf]
                                        rows C_DIL..     = [Wd_0 | Wd_1 | Vg]
    bfg_ref : (2*C_DIL, 1)              [b_dil ; b_dil]
    wo_ref  : (C_RES, C_DIL)            1x1 output conv weight
    bo_ref  : (C_RES, 1)                1x1 output conv bias
    out_ref : (C_RES, B*T)
    """
    lane = lax.broadcasted_iota(jnp.int32, (C_RES, N_LANES), 1)
    tpos = lane % T                         # time position inside each batch segment

    x = x_ref[...]                          # (C_RES, B*T)

    # Stack the K causal dilated taps + conditioning into one MXU operand.
    pieces = []
    for k in range(K):                      # K tiny & static -> unrolled
        shift = (K - 1 - k) * DILATION
        if shift == 0:
            pieces.append(x)
        else:
            # causal shift via XLU roll; zero positions that wrapped across
            # the (circular) roll and across batch-segment boundaries.
            rolled = pltpu.roll(x, shift=shift, axis=1)
            pieces.append(jnp.where(tpos < shift, 0.0, rolled))
    pieces.append(h_ref[...])               # (C_COND, B*T)
    s = jnp.concatenate(pieces, axis=0)     # (N_IN, B*T), all pieces 8-row aligned

    # One fused MXU pass: K dilated taps + Vf/Vg conditioning; bias via VPU add.
    fg = jnp.dot(a_ref[...], s, preferred_element_type=jnp.float32) + bfg_ref[...]
    z = jnp.tanh(fg[:C_DIL]) * jax.nn.sigmoid(fg[C_DIL:])            # (C_DIL, B*T)

    # 1x1 output conv + bias.
    out = jnp.dot(wo_ref[...], z, preferred_element_type=jnp.float32) + bo_ref[...]
    out_ref[...] = out.astype(out_ref.dtype)


# ------------------------------- wrapper ------------------------------------
def pack_params(p):
    """Fold the 6 small weight tensors into 4 matmul-friendly operands."""
    taps = [p["w_dil"][k] for k in range(K)]
    a_top = jnp.concatenate(taps + [p["vf"]], axis=1)     # (C_DIL, N_IN)
    a_bot = jnp.concatenate(taps + [p["vg"]], axis=1)     # (C_DIL, N_IN)
    a = jnp.concatenate([a_top, a_bot], axis=0)           # (2*C_DIL, N_IN)
    b_fg = jnp.concatenate([p["b_dil"], p["b_dil"]], axis=0)  # (2*C_DIL, 1)
    return a, b_fg, p["wo"], p["bo"]


@jax.jit
def wavenet_layer(x, h, a, b_fg, wo, bo):
    """x: (B, C_RES, T), h: (B, C_COND, T) -> (B, C_RES, T)."""
    # Layout plumbing outside the kernel: present lane-dense (C, B*T) slabs.
    xf = x.transpose(1, 0, 2).reshape(C_RES, N_LANES)
    hf = h.transpose(1, 0, 2).reshape(C_COND, N_LANES)

    vmem = lambda: pl.BlockSpec(memory_space=pltpu.MemorySpace.VMEM)
    out = pl.pallas_call(
        wavenet_layer_kernel,
        out_shape=jax.ShapeDtypeStruct((C_RES, N_LANES), jnp.float32),
        in_specs=[vmem()] * 6,
        out_specs=vmem(),
    )(xf, hf, a, b_fg, wo, bo)

    return out.reshape(C_RES, B, T).transpose(1, 0, 2)


# ---------------------------- pure-JAX reference ----------------------------
def ref_forward(x, h, p):
    xpad = jnp.pad(x, ((0, 0), (0, 0), (PAD, 0)))
    y = sum(jnp.einsum("oi,bit->bot", p["w_dil"][k],
                       xpad[:, :, k * DILATION:k * DILATION + T])
            for k in range(K)) + p["b_dil"][None]
    f = y + jnp.einsum("oc,bct->bot", p["vf"], h)
    g = y + jnp.einsum("oc,bct->bot", p["vg"], h)
    z = jnp.tanh(f) * jax.nn.sigmoid(g)
    return jnp.einsum("oc,bct->bot", p["wo"], z) + p["bo"][None]


# --------------------------------- main -------------------------------------
if __name__ == "__main__":
    key = jax.random.PRNGKey(0)
    keys = jax.random.split(key, 8)

    params = {
        "w_dil": 0.2 * jax.random.normal(keys[0], (K, C_DIL, C_RES), jnp.float32),
        "b_dil": 0.1 * jax.random.normal(keys[1], (C_DIL, 1), jnp.float32),
        "vf":    0.2 * jax.random.normal(keys[2], (C_DIL, C_COND), jnp.float32),
        "vg":    0.2 * jax.random.normal(keys[3], (C_DIL, C_COND), jnp.float32),
        "wo":    0.2 * jax.random.normal(keys[4], (C_RES, C_DIL), jnp.float32),
        "bo":    0.1 * jax.random.normal(keys[5], (C_RES, 1), jnp.float32),
    }
    x = jax.random.normal(keys[6], (B, C_RES, T), jnp.float32)
    h = jax.random.normal(keys[7], (B, C_COND, T), jnp.float32)

    a, b_fg, wo, bo = pack_params(params)   # one-time packing

    out = wavenet_layer(x, h, a, b_fg, wo, bo)
    out = jax.block_until_ready(out)

    ref = ref_forward(x, h, params)
    assert out.shape == (B, C_RES, T)
    assert jnp.allclose(out, ref, atol=1e-4, rtol=1e-4), "mismatch vs reference"

    print("KERNEL_OK")
</pallas_src>

<mosaic_0001>
module attributes {stable_mosaic.version = 11 : i64} {
  func.func @wavenet_layer_kernel(%arg0: memref<8x256xf32, #tpu.memory_space<vmem>>, %arg1: memref<8x256xf32, #tpu.memory_space<vmem>>, %arg2: memref<32x24xf32, #tpu.memory_space<vmem>>, %arg3: memref<32x1xf32, #tpu.memory_space<vmem>>, %arg4: memref<8x16xf32, #tpu.memory_space<vmem>>, %arg5: memref<8x1xf32, #tpu.memory_space<vmem>>, %arg6: memref<8x256xf32, #tpu.memory_space<vmem>>) attributes {dimension_semantics = [], scalar_prefetch = 0 : i64, scratch_operands = 0 : i64, tpu.core_type = #tpu.core_type<tc>} {
    %0 = tpu.iota {dimensions = array<i32: 1>} : vector<8x256xi32>
    %c128_i32 = arith.constant 128 : i32
    %c0_i32 = arith.constant 0 : i32
    %1 = arith.cmpi eq, %c128_i32, %c0_i32 : i32
    %c1_i32 = arith.constant 1 : i32
    %2 = arith.select %1, %c1_i32, %c128_i32 : i32
    %3 = vector.broadcast %2 : i32 to vector<8x256xi32>
    %4 = arith.remsi %0, %3 : vector<8x256xi32>
    %c0_i32_0 = arith.constant 0 : i32
    %5 = vector.broadcast %c0_i32_0 : i32 to vector<8x256xi32>
    %6 = arith.cmpi ne, %4, %5 : vector<8x256xi32>
    %c0_i32_1 = arith.constant 0 : i32
    %7 = vector.broadcast %c0_i32_1 : i32 to vector<8x256xi32>
    %8 = arith.cmpi slt, %4, %7 : vector<8x256xi32>
    %c0_i32_2 = arith.constant 0 : i32
    %9 = arith.cmpi slt, %2, %c0_i32_2 : i32
    %10 = vector.broadcast %9 : i1 to vector<8x256xi1>
    %11 = vector.broadcast %10 : vector<8x256xi1> to vector<8x256xi1>
    %12 = arith.xori %8, %11 : vector<8x256xi1>
    %13 = arith.andi %12, %6 : vector<8x256xi1>
    %14 = vector.broadcast %2 : i32 to vector<8x256xi32>
    %15 = arith.addi %4, %14 : vector<8x256xi32>
    %16 = arith.select %13, %15, %4 : vector<8x256xi1>, vector<8x256xi32>
    %c0 = arith.constant 0 : index
    %c0_3 = arith.constant 0 : index
    %17 = vector.load %arg0[%c0, %c0_3] : memref<8x256xf32, #tpu.memory_space<vmem>>, vector<8x256xf32>
    %c2_i32 = arith.constant 2 : i32
    %18 = tpu.dynamic_rotate %17 by %c2_i32 dim 1 : vector<8x256xf32>, i32 -> vector<8x256xf32>
    %c2_i32_4 = arith.constant 2 : i32
    %19 = vector.broadcast %c2_i32_4 : i32 to vector<8x256xi32>
    %20 = arith.cmpi slt, %16, %19 : vector<8x256xi32>
    %cst = arith.constant 0.000000e+00 : f32
    %21 = vector.broadcast %cst : f32 to vector<8x256xf32>
    %22 = arith.select %20, %21, %18 : vector<8x256xi1>, vector<8x256xf32>
    %c0_5 = arith.constant 0 : index
    %c0_6 = arith.constant 0 : index
    %23 = vector.load %arg1[%c0_5, %c0_6] : memref<8x256xf32, #tpu.memory_space<vmem>>, vector<8x256xf32>
    %24 = tpu.concatenate %22, %17, %23 in 0 : vector<8x256xf32>, vector<8x256xf32>, vector<8x256xf32> -> vector<24x256xf32>
    %c0_7 = arith.constant 0 : index
    %c0_8 = arith.constant 0 : index
    %25 = vector.load %arg2[%c0_7, %c0_8] : memref<32x24xf32, #tpu.memory_space<vmem>>, vector<32x24xf32>
    %cst_9 = arith.constant dense<0.000000e+00> : vector<32x256xf32>
    %26 = tpu.matmul %25, %24, %cst_9 {dimension_numbers = #tpu.dot_dimension_numbers<[1], [0], [0], [1], [0, 0, 1, 1], [], []>} : vector<32x24xf32>, vector<24x256xf32>, vector<32x256xf32> -> vector<32x256xf32>
    %c0_10 = arith.constant 0 : index
    %c0_11 = arith.constant 0 : index
    %27 = vector.load %arg3[%c0_10, %c0_11] : memref<32x1xf32, #tpu.memory_space<vmem>>, vector<32x1xf32>
    %28 = vector.broadcast %27 : vector<32x1xf32> to vector<32x256xf32>
    %29 = arith.addf %26, %28 : vector<32x256xf32>
    %30 = vector.extract_strided_slice %29 {offsets = [0, 0], sizes = [16, 256], strides = [1, 1]} : vector<32x256xf32> to vector<16x256xf32>
    %31 = math.tanh %30 : vector<16x256xf32>
    %32 = vector.extract_strided_slice %29 {offsets = [16, 0], sizes = [16, 256], strides = [1, 1]} : vector<32x256xf32> to vector<16x256xf32>
    %33 = arith.negf %32 : vector<16x256xf32>
    %34 = math.exp %33 : vector<16x256xf32>
    %cst_12 = arith.constant 1.000000e+00 : f32
    %35 = vector.broadcast %cst_12 : f32 to vector<16x256xf32>
    %36 = arith.addf %35, %34 : vector<16x256xf32>
    %37 = arith.divf %35, %36 : vector<16x256xf32>
    %38 = arith.mulf %31, %37 : vector<16x256xf32>
    %c0_13 = arith.constant 0 : index
    %c0_14 = arith.constant 0 : index
    %39 = vector.load %arg4[%c0_13, %c0_14] : memref<8x16xf32, #tpu.memory_space<vmem>>, vector<8x16xf32>
    %cst_15 = arith.constant dense<0.000000e+00> : vector<8x256xf32>
    %40 = tpu.matmul %39, %38, %cst_15 {dimension_numbers = #tpu.dot_dimension_numbers<[1], [0], [0], [1], [0, 0, 1, 1], [], []>} : vector<8x16xf32>, vector<16x256xf32>, vector<8x256xf32> -> vector<8x256xf32>
    %c0_16 = arith.constant 0 : index
    %c0_17 = arith.constant 0 : index
    %41 = vector.load %arg5[%c0_16, %c0_17] : memref<8x1xf32, #tpu.memory_space<vmem>>, vector<8x1xf32>
    %42 = vector.broadcast %41 : vector<8x1xf32> to vector<8x256xf32>
    %43 = arith.addf %40, %42 : vector<8x256xf32>
    %c0_18 = arith.constant 0 : index
    %c0_19 = arith.constant 0 : index
    %44 = vector.load %arg6[%c0_18, %c0_19] : memref<8x256xf32, #tpu.memory_space<vmem>>, vector<8x256xf32>
    tpu.vector_store %arg6[%c0_18, %c0_19], %43 {strides = array<i32>} : memref<8x256xf32, #tpu.memory_space<vmem>>, vector<8x256xf32>,
    return
  }
}

</mosaic_0001>

<llo_original>
// kernel: wavenet_layer.1
$region0: #{wavenet_layer.1}
  #allocation0 [shape = 'u32[]', space=smem, size = 0x4, offset = 0x4, fixed_abs, tag = 'smem constant byte address 0x4 - core index']
  #allocation1 [shape = 'u32[144,128]{1,0:T(1,128)}', space=vmem, size = 0x12000, scoped, tag = 'internal scratch']
  %s0 = inlined_call_operand.vmem [shape: f32[8,256], index: 0, kind: input, shape index: {}]
  %s1 = inlined_call_operand.vmem [shape: f32[8,256], index: 1, kind: input, shape index: {}]
  %s2 = inlined_call_operand.vmem [shape: f32[32,24], index: 2, kind: input, shape index: {}]
  %s3 = inlined_call_operand.vmem [shape: f32[32,1], index: 3, kind: input, shape index: {}]
  %s4 = inlined_call_operand.vmem [shape: f32[8,16], index: 4, kind: input, shape index: {}]
  %s5 = inlined_call_operand.vmem [shape: f32[8,1], index: 5, kind: input, shape index: {}]
  %s6 = inlined_call_operand.hbm [shape: f32[8,256], index: 6, kind: output, shape index: {}]
  %s7 = sld [smem:[#allocation0]]
  $region34: #{wavenet_layer.1} parent=0
    _
  %s9 = ssub.s32 1, %s7
  %s10 = scalar_select 0, %s9, %s7
  $region1: #{wavenet_layer.1} parent=0
    #allocation2 [shape = 'u8[8192]{0}', space=vmem, size = 0x2000, scoped, tag = 'output window, operand 0, single buffered']
    #allocation3 [shape = 's32[1]{0}', space=sflag, size = 0x4, scoped, tag = 'scoped memory for wavenet_layer.1']
    %11 = vsyncpa [#allocation3], 0
    // Predicated region
    $region2: #{wavenet_layer.1} parent=1 // pred_check
      _
    $region3: #{wavenet_layer.1} parent=1 // pred_check_branch
      %13 = sbr.rel (0) target = $region5
    $region4: #{wavenet_layer.1} parent=1 // pred_region
      _
    $region5: #{wavenet_layer.1} parent=1 // pred_fallthru
      _
    // Predicated region
    $region6: #{wavenet_layer.1} parent=1 // pred_check
      _
    $region7: #{wavenet_layer.1} parent=1 // pred_check_branch
      %15 = sbr.rel (0) target = $region9
    $region8: #{wavenet_layer.1} parent=1 // pred_region
      _
    $region9: #{wavenet_layer.1} parent=1 // pred_fallthru
      _
    // Predicated region
    $region10: #{wavenet_layer.1} parent=1 // pred_check
      _
    $region11: #{wavenet_layer.1} parent=1 // pred_check_branch
      %17 = sbr.rel (0) target = $region13
    $region12: #{wavenet_layer.1} parent=1 // pred_region
      _
    $region13: #{wavenet_layer.1} parent=1 // pred_fallthru
      _
    // Predicated region
    $region14: #{wavenet_layer.1} parent=1 // pred_check
      _
    $region15: #{wavenet_layer.1} parent=1 // pred_check_branch
      %19 = sbr.rel (0) target = $region17
    $region16: #{wavenet_layer.1} parent=1 // pred_region
      _
    $region17: #{wavenet_layer.1} parent=1 // pred_fallthru
      _
    // Predicated region
    $region18: #{wavenet_layer.1} parent=1 // pred_check
      _
    $region19: #{wavenet_layer.1} parent=1 // pred_check_branch
      %21 = sbr.rel (0) target = $region21
    $region20: #{wavenet_layer.1} parent=1 // pred_region
      _
    $region21: #{wavenet_layer.1} parent=1 // pred_fallthru
      _
    // Predicated region
    $region22: #{wavenet_layer.1} parent=1 // pred_check
      _
    $region23: #{wavenet_layer.1} parent=1 // pred_check_branch
      %23 = sbr.rel (0) target = $region25
    $region24: #{wavenet_layer.1} parent=1 // pred_region
      _
    $region25: #{wavenet_layer.1} parent=1 // pred_fallthru
      _
    %v24 = vlaneseq
    %v25 = vand.u32 %v24, 127
    %v26 = vadd.s32 %v25, 128
    %vm27 = vcmp.lt.s32.totalorder %v25, 0
    %v28 = vsub.s32 0, %v25
    %v29 = vsel %vm27, %v28, %v25
    %v30 = vshrl.u32 %v29, 7
    %v31 = vand.u32 %v29, 127
    %v32 = vsub.s32 0, %v31
    %v33 = vsel %vm27, %v32, %v31
    %vm34 = vcmp.lt.s32.totalorder %v26, 0
    %v35 = vsub.s32 0, %v26
    %v36 = vsel %vm34, %v35, %v26
    %v37 = vshrl.u32 %v36, 7
    %v38 = vand.u32 %v36, 127
    %v39 = vsub.s32 0, %v38
    %v40 = vsel %vm34, %v39, %v38
    %vm41 = vcmp.ne.s32.totalorder %v33, 0
    %vm42 = vcmp.ne.s32.totalorder %v40, 0
    %vm43 = vcmp.lt.s32.totalorder %v33, 0
    %vm44 = vcmp.lt.s32.totalorder %v40, 0
    %vm45 = vmand %vm43, %vm41
    %vm46 = vmand %vm44, %vm42
    %v47 = vadd.s32 %v33, 128
    %v48 = vadd.s32 %v40, 128
    %v49 = vsel %vm45, %v47, %v33
    %v50 = vsel %vm46, %v48, %v40
    %v51 = vld [vmem:[%s0] sm:$0xff]
    %v52 = vld [vmem:[%s0 + $0x8] sm:$0xff]
    %53 = vrot.lane.b32.xlu0 %v51, 2
    %v54 = vpop.permute.xlu0 %53
    %55 = vrot.lane.b32.xlu0 %v52, 2
    %v56 = vpop.permute.xlu0 %55
    %vm57 = vcmp.lt.s32.totalorder %v25, 2
    %v58 = vsel %vm57, %v54, %v56
    %v59 = vsel %vm57, %v56, %v54
    %vm60 = vcmp.lt.s32.totalorder %v49, 2
    %vm61 = vcmp.lt.s32.totalorder %v50, 2
    %v62 = vsel %vm60, 0.0, %v59
    %v63 = vsel %vm61, 0.0, %v58
    %v64 = vld [vmem:[%s1] sm:$0xff]
    %v65 = vld [vmem:[%s1 + $0x8] sm:$0xff]
    %v66 = vld [vmem:[%s2] sm:$0xff]
    %v67 = vld [vmem:[%s2 + $0x8] sm:$0xff]
    %v68 = vld [vmem:[%s2 + $0x10] sm:$0xff]
    %v69 = vld [vmem:[%s2 + $0x18] sm:$0xff]
    %v70 = vld [vmem:[%s3] sm:$0xff]
    %v71 = vld [vmem:[%s3 + $0x8] sm:$0xff]
    %v72 = vld [vmem:[%s3 + $0x10] sm:$0xff]
    %v73 = vld [vmem:[%s3 + $0x18] sm:$0xff]
    %75 = vset.pattern.permute.xlu0 0
    %76 = vperm.xlu0 %75, %v70
    %v77 = vpop.permute.xlu0 %76
    %80 = vset.pattern.permute.xlu0 0
    %81 = vperm.xlu0 %80, %v71
    %v82 = vpop.permute.xlu0 %81
    %85 = vset.pattern.permute.xlu0 0
    %86 = vperm.xlu0 %85, %v72
    %v87 = vpop.permute.xlu0 %86
    %90 = vset.pattern.permute.xlu0 0
    %91 = vperm.xlu0 %90, %v73
    %v92 = vpop.permute.xlu0 %91
    %vm94 = vcmask 195584
    %v96 = vsel %vm94, %v66, 0
    %v99 = vsel %vm94, %v67, 0
    %v102 = vsel %vm94, %v68, 0
    %v105 = vsel %vm94, %v69, 0
    %107 = vmatprep.subr.mxu0 %v63
    %108 = vmatpush1.msra.mxu0 %v62
    %109 = vmatprep.subr.mxu0 %v52
    %110 = vmatpush1.msra.mxu0 %v51
    %111 = vmatprep.subr.mxu0 %v65
    %112 = vmatpush1.msra.mxu0 %v64
    %113 = vmatprep.subr.mxu0 0.0
    %114 = vmatpush1.msra.mxu0 0.0
    %115 = vmatprep.subr.mxu0 0.0
    %116 = vmatpush1.msra.mxu0 0.0
    %117 = vmatprep.subr.mxu0 0.0
    %118 = vmatpush1.msra.mxu0 0.0
    %119 = vmatprep.subr.mxu0 0.0
    %120 = vmatpush1.msra.mxu0 0.0
    %121 = vmatprep.subr.mxu0 0.0
    %122 = vmatpush1.msra.mxu0 0.0
    %123 = vmatprep.subr.mxu0 0.0
    %124 = vmatpush1.msra.mxu0 0.0
    %125 = vmatprep.subr.mxu0 0.0
    %126 = vmatpush1.msra.mxu0 0.0
    %127 = vmatprep.subr.mxu0 0.0
    %128 = vmatpush1.msra.mxu0 0.0
    %129 = vmatprep.subr.mxu0 0.0
    %130 = vmatpush1.msra.mxu0 0.0
    %131 = vmatprep.subr.mxu0 0.0
    %132 = vmatpush1.msra.mxu0 0.0
    %133 = vmatprep.subr.mxu0 0.0
    %134 = vmatpush1.msra.mxu0 0.0
    %135 = vmatprep.subr.mxu0 0.0
    %136 = vmatpush1.msra.mxu0 0.0
    %137 = vmatprep.subr.mxu0 0.0
    %138 = vmatpush1.msra.mxu0 0.0
    %139 = vmatprep.subr.mxu0 0.0
    %140 = vmatpush1.msra.mxu0 0.0
    %141 = vmatprep.subr.mxu0 0.0
    %142 = vmatpush1.msra.mxu0 0.0
    %143 = vmatprep.subr.mxu0 0.0
    %144 = vmatpush1.msra.mxu0 0.0
    %145 = vmatprep.subr.mxu0 0.0
    %146 = vmatpush1.msra.mxu0 0.0
    %147 = vmatprep.subr.mxu0 0.0
    %148 = vmatpush1.msra.mxu0 0.0
    %149 = vmatprep.subr.mxu0 0.0
    %150 = vmatpush1.msra.mxu0 0.0
    %151 = vmatprep.subr.mxu0 0.0
    %152 = vmatpush1.msra.mxu0 0.0
    %153 = vmatprep.subr.mxu0 0.0
    %154 = vmatpush1.msra.mxu0 0.0
    %155 = vmatprep.subr.mxu0 0.0
    %156 = vmatpush1.msra.mxu0 0.0
    %157 = vmatprep.subr.mxu0 0.0
    %158 = vmatpush1.msra.mxu0 0.0
    %159 = vmatprep.subr.mxu0 0.0
    %160 = vmatpush1.msra.mxu0 0.0
    %161 = vmatprep.subr.mxu0 0.0
    %162 = vmatpush1.msra.mxu0 0.0
    %163 = vmatprep.subr.mxu0 0.0
    %164 = vmatpush1.msra.mxu0 0.0
    %165 = vmatprep.subr.mxu0 0.0
    %166 = vmatpush1.msra.mxu0 0.0
    %167 = vmatprep.subr.mxu0 0.0
    %168 = vmatpush1.msra.mxu0 0.0
    %169 = vmatprep.subr.mxu0 0.0
    %170 = vmatpush1.msra.mxu0 0.0
    %171 = vmatprep.mubr.f32.mxu0 0.0
    %172 = vmatmul.mubr.f32.gmra.mrb[0].mxu0 %v96
    %v173 = vpop.f32.mrb[0].mxu0
    %v174 = vadd.f32 %v77, %v173
    %v175 = vpop.f32.mrb[0].mxu0
    %v176 = vadd.f32 %v77, %v175
    %177 = vmatprep.mubr.f32.mxu0 0.0
    %178 = vmatmul.mubr.f32.gmra.mrb[0].mxu0 %v99
    %v179 = vpop.f32.mrb[0].mxu0
    %v180 = vadd.f32 %v82, %v179
    %v181 = vpop.f32.mrb[0].mxu0
    %v182 = vadd.f32 %v82, %v181
    %183 = vmatprep.mubr.f32.mxu0 0.0
    %184 = vmatmul.mubr.f32.gmra.mrb[0].mxu0 %v102
    %v185 = vpop.f32.mrb[0].mxu0
    %v186 = vadd.f32 %v87, %v185
    %v187 = vpop.f32.mrb[0].mxu0
    %v188 = vadd.f32 %v87, %v187
    %189 = vmatprep.mubr.f32.mxu0 0.0
    %190 = vmatmul.mubr.f32.gmra.mrb[0].mxu0 %v105
    %v191 = vpop.f32.mrb[0].mxu0
    %v192 = vadd.f32 %v92, %v191
    %v193 = vpop.f32.mrb[0].mxu0
    %v194 = vadd.f32 %v92, %v193
    %195 = vdwg.mxu0
    %v196 = vtanh.pop %v174
    %v197 = vtanh.pop %v176
    %v198 = vtanh.pop %v180
    %v199 = vtanh.pop %v182
    %v200 = vxor.u32 %v186, 2147483648
    %v201 = vxor.u32 %v188, 2147483648
    %v202 = vxor.u32 %v192, 2147483648
    %v203 = vxor.u32 %v194, 2147483648
    %v204 = vmul.f32 %v200, 1.442695
    %v205 = vpow.pop %v204
    %v206 = vmul.f32 %v201, 1.442695
    %v207 = vpow.pop %v206
    %v208 = vmul.f32 %v202, 1.442695
    %v209 = vpow.pop %v208
    %v210 = vmul.f32 %v203, 1.442695
    %v211 = vpow.pop %v210
    %v212 = vadd.f32 %v205, 1.0
    %v213 = vadd.f32 %v207, 1.0
    %v214 = vadd.f32 %v209, 1.0
    %v215 = vadd.f32 %v211, 1.0
    %v216 = vrcp.pop %v212
    %v217 = vmul.f32 1.0, %v216
    %v218 = vrcp.pop %v213
    %v219 = vmul.f32 1.0, %v218
    %v220 = vrcp.pop %v214
    %v221 = vmul.f32 1.0, %v220
    %v222 = vrcp.pop %v215
    %v223 = vmul.f32 1.0, %v222
    %v224 = vmul.f32 %v196, %v217
    %v225 = vmul.f32 %v197, %v219
    %v226 = vmul.f32 %v198, %v221
    %v227 = vmul.f32 %v199, %v223
    %v228 = vld [vmem:[%s4] sm:$0xff]
    %v229 = vld [vmem:[%s5] sm:$0xff]
    %231 = vset.pattern.permute.xlu0 0
    %232 = vperm.xlu0 %231, %v229
    %v233 = vpop.permute.xlu0 %232
    %vm235 = vcmask 130048
    %v237 = vsel %vm235, %v228, 0
    %239 = vmatprep.subr.mxu0 %v225
    %240 = vmatpush1.msra.mxu0 %v224
    %241 = vmatprep.subr.mxu0 %v227
    %242 = vmatpush1.msra.mxu0 %v226
    %243 = vmatprep.subr.mxu0 0.0
    %244 = vmatpush1.msra.mxu0 0.0
    %245 = vmatprep.subr.mxu0 0.0
    %246 = vmatpush1.msra.mxu0 0.0
    %247 = vmatprep.subr.mxu0 0.0
    %248 = vmatpush1.msra.mxu0 0.0
    %249 = vmatprep.subr.mxu0 0.0
    %250 = vmatpush1.msra.mxu0 0.0
    %251 = vmatprep.subr.mxu0 0.0
    %252 = vmatpush1.msra.mxu0 0.0
    %253 = vmatprep.subr.mxu0 0.0
    %254 = vmatpush1.msra.mxu0 0.0
    %255 = vmatprep.subr.mxu0 0.0
    %256 = vmatpush1.msra.mxu0 0.0
    %257 = vmatprep.subr.mxu0 0.0
    %258 = vmatpush1.msra.mxu0 0.0
    %259 = vmatprep.subr.mxu0 0.0
    %260 = vmatpush1.msra.mxu0 0.0
    %261 = vmatprep.subr.mxu0 0.0
    %262 = vmatpush1.msra.mxu0 0.0
    %263 = vmatprep.subr.mxu0 0.0
    %264 = vmatpush1.msra.mxu0 0.0
    %265 = vmatprep.subr.mxu0 0.0
    %266 = vmatpush1.msra.mxu0 0.0
    %267 = vmatprep.subr.mxu0 0.0
    %268 = vmatpush1.msra.mxu0 0.0
    %269 = vmatprep.subr.mxu0 0.0
    %270 = vmatpush1.msra.mxu0 0.0
    %271 = vmatprep.subr.mxu0 0.0
    %272 = vmatpush1.msra.mxu0 0.0
    %273 = vmatprep.subr.mxu0 0.0
    %274 = vmatpush1.msra.mxu0 0.0
    %275 = vmatprep.subr.mxu0 0.0
    %276 = vmatpush1.msra.mxu0 0.0
    %277 = vmatprep.subr.mxu0 0.0
    %278 = vmatpush1.msra.mxu0 0.0
    %279 = vmatprep.subr.mxu0 0.0
    %280 = vmatpush1.msra.mxu0 0.0
    %281 = vmatprep.subr.mxu0 0.0
    %282 = vmatpush1.msra.mxu0 0.0
    %283 = vmatprep.subr.mxu0 0.0
    %284 = vmatpush1.msra.mxu0 0.0
    %285 = vmatprep.subr.mxu0 0.0
    %286 = vmatpush1.msra.mxu0 0.0
    %287 = vmatprep.subr.mxu0 0.0
    %288 = vmatpush1.msra.mxu0 0.0
    %289 = vmatprep.subr.mxu0 0.0
    %290 = vmatpush1.msra.mxu0 0.0
    %291 = vmatprep.subr.mxu0 0.0
    %292 = vmatpush1.msra.mxu0 0.0
    %293 = vmatprep.subr.mxu0 0.0
    %294 = vmatpush1.msra.mxu0 0.0
    %295 = vmatprep.subr.mxu0 0.0
    %296 = vmatpush1.msra.mxu0 0.0
    %297 = vmatprep.subr.mxu0 0.0
    %298 = vmatpush1.msra.mxu0 0.0
    %299 = vmatprep.subr.mxu0 0.0
    %300 = vmatpush1.msra.mxu0 0.0
    %301 = vmatprep.subr.mxu0 0.0
    %302 = vmatpush1.msra.mxu0 0.0
    %303 = vmatprep.mubr.f32.mxu0 0.0
    %304 = vmatmul.mubr.f32.gmra.mrb[0].mxu0 %v237
    %v305 = vpop.f32.mrb[0].mxu0
    %v306 = vadd.f32 %v233, %v305
    %v307 = vpop.f32.mrb[0].mxu0
    %v308 = vadd.f32 %v233, %v307
    %309 = vdwg.mxu0
    %310 = vst [vmem:[#allocation2] sm:$0xff] %v306
    %311 = vst [vmem:[#allocation2 + $0x8] sm:$0xff] %v308
    // Predicated region
    $region26: #{wavenet_layer.1} parent=1 // pred_check
      _
    $region27: #{wavenet_layer.1} parent=1 // pred_check_branch
      %313 = sbr.rel (0) target = $region29
    $region28: #{wavenet_layer.1} parent=1 // pred_region
      %s315 = ssub.s32 256, 256
      %316 = vsyncadd [#allocation3], %s315
      %s318 = sshll.u32 [#allocation2], 4
      %s319 = int_to_ptr.vmem [resolvable:$true] %s318
      %321 = dma.vmem_to_hbm [thread:$0]  %s319, 256, %s6, [#allocation3]
    $region29: #{wavenet_layer.1} parent=1 // pred_fallthru
      _
    // Predicated region
    $region30: #{wavenet_layer.1} parent=1 // pred_check
      _
    $region31: #{wavenet_layer.1} parent=1 // pred_check_branch
      %323 = sbr.rel (0) target = $region33
    $region32: #{wavenet_layer.1} parent=1 // pred_region
      %324 = dma.done [#allocation3], 256
    $region33: #{wavenet_layer.1} parent=1 // pred_fallthru
      _
    %325 = vsyncpa [#allocation3], 1

</llo_original>
